<compile_context>
chip_gen: v7x
topology: tpu7x:2x2x1
jax: 0.10.0
libtpu: 0.0.40
codegen_flags: <defaults>
</compile_context>

<pallas_src>
import functools

import jax
import jax.numpy as jnp
from jax import lax
from jax.experimental import pallas as pl
from jax.experimental.pallas import tpu as pltpu

_MB = 1024 * 1024


# ---------------------------------------------------------------------------
# pl.Buffered(1) support probe (single-buffered resident blocks). Falls back
# to the default double-buffering on JAX versions / lowerings without it.
# ---------------------------------------------------------------------------
_BUFFERED_1_OK = None


def _buffered_1_supported():
    global _BUFFERED_1_OK
    if _BUFFERED_1_OK is None:
        try:
            def _probe(a_ref, b_ref, o_ref):
                o_ref[...] = a_ref[...] + b_ref[...]

            out = pl.pallas_call(
                _probe,
                grid=(2,),
                in_specs=[
                    pl.BlockSpec((8, 128), lambda i: (0, 0),
                                 pipeline_mode=pl.Buffered(1)),
                    pl.BlockSpec((8, 128), lambda i: (i, 0),
                                 pipeline_mode=pl.Buffered(1)),
                ],
                out_specs=pl.BlockSpec((8, 128), lambda i: (i, 0)),
                out_shape=jax.ShapeDtypeStruct((16, 128), jnp.float32),
            )(jnp.zeros((8, 128), jnp.float32), jnp.zeros((16, 128), jnp.float32))
            jax.block_until_ready(out)
            _BUFFERED_1_OK = True
        except Exception:
            _BUFFERED_1_OK = False
    return _BUFFERED_1_OK


def _resident_spec(shape, index_map):
    """BlockSpec for a block whose index is constant along the inner grid axis."""
    if _buffered_1_supported():
        return pl.BlockSpec(shape, index_map, pipeline_mode=pl.Buffered(1))
    return pl.BlockSpec(shape, index_map)


def _vmem_limit(nbytes):
    # ~1.5x headroom for compiler-internal temporaries, clamped to a sane range.
    return int(min(100 * _MB, max(32 * _MB, 1.5 * nbytes)))


# ---------------------------------------------------------------------------
# Kernel 1: fused (LoRA + attn_scale folded) q/k/v projection.
#   One wide (tile,H)@(H,3H) bf16 matmul per tile; single (B,S,3H) bf16 output.
# ---------------------------------------------------------------------------
def _qkv_proj_kernel(x_ref, w_ref, qkv_ref):
    # x: (1, TS, H) bf16; w: (H, 3H) bf16 (folded, pre-transposed in the wrapper).
    res = jnp.dot(x_ref[0], w_ref[...], preferred_element_type=jnp.float32)
    qkv_ref[0] = res.astype(qkv_ref.dtype)


def qkv_proj(x, w_qkv_t, *, seq_tile):
    B, S, H = x.shape
    H3 = w_qkv_t.shape[1]
    grid = (B, S // seq_tile)
    need = (2 * seq_tile * H * 2          # x tile (double-buffered, bf16)
            + H * H3 * 2                  # fused weight (single-buffered, bf16)
            + 2 * seq_tile * H3 * 2       # output tile (double-buffered, bf16)
            + 2 * seq_tile * H3 * 4)      # f32 matmul result temporary
    return pl.pallas_call(
        _qkv_proj_kernel,
        grid=grid,
        in_specs=[
            pl.BlockSpec((1, seq_tile, H), lambda b, s: (b, s, 0)),
            _resident_spec((H, H3), lambda b, s: (0, 0)),
        ],
        out_specs=pl.BlockSpec((1, seq_tile, H3), lambda b, s: (b, s, 0)),
        out_shape=jax.ShapeDtypeStruct((B, S, H3), jnp.bfloat16),
        compiler_params=pltpu.CompilerParams(
            dimension_semantics=("parallel", "parallel"),
            vmem_limit_bytes=_vmem_limit(need)),
    )(x, w_qkv_t)


# ---------------------------------------------------------------------------
# Kernel 2: multi-head attention with the output projection fused in.
#   grid = (B, S_q_tiles).  q tile + resident full-S K/V come straight out of
#   the single (B, S, 3H) qkv tensor via column-block BlockSpecs.  Per-head
#   ctx is written into a bf16 VMEM slab; one wide Wo matmul + bias at the end.
# ---------------------------------------------------------------------------
def _attn_out_kernel(q_ref, k_ref, v_ref, wo_ref, bo_ref, o_ref, ctx_ref, *,
                     heads, head_dim):
    # q_ref: (1, TSQ, H) bf16 (attn_scale pre-folded into the q weights)
    # k_ref/v_ref: (1, S, H) bf16 ; wo_ref: (H, H) bf16 ; bo_ref: (1, H) f32
    # ctx_ref: (TSQ, H) bf16 VMEM scratch slab.
    trans_last = (((1,), (1,)), ((), ()))   # contract last dims of both (no .T)
    for h in range(heads):                  # small static int -> unrolled
        lo = h * head_dim
        hi = lo + head_dim
        q_h = q_ref[0, :, lo:hi]            # (TSQ, hd) bf16, ref-level slice
        k_h = k_ref[0, :, lo:hi]            # (S,   hd) bf16
        v_h = v_ref[0, :, lo:hi]            # (S,   hd) bf16
        s = lax.dot_general(q_h, k_h, trans_last,
                            preferred_element_type=jnp.float32)       # (TSQ, S) f32
        # softmax kept in f32 (v5e VPU/EUP have no bf16); denom via EUP approx rcp.
        m = jnp.max(s, axis=-1, keepdims=True)
        p = jnp.exp(s - m)
        l = jnp.sum(p, axis=-1, keepdims=True)
        probs = (p * pl.reciprocal(l, approx=True)).astype(jnp.bfloat16)
        ctx = jnp.dot(probs, v_h, preferred_element_type=jnp.float32)  # (TSQ, hd)
        ctx_ref[:, lo:hi] = ctx.astype(jnp.bfloat16)
    # Fused output projection: single wide (TSQ, H) @ (H, H) matmul + bias.
    out = jnp.dot(ctx_ref[...], wo_ref[...], preferred_element_type=jnp.float32)
    o_ref[0] = out + bo_ref[...]


def attn_out_proj(qkv, wo_t, bo, *, heads, seq_tile):
    B, S, H3 = qkv.shape
    H = H3 // 3
    head_dim = H // heads
    grid = (B, S // seq_tile)

    q_spec = pl.BlockSpec((1, seq_tile, H), lambda b, s: (b, s, 0))
    k_spec = _resident_spec((1, S, H), lambda b, s: (b, 0, 1))
    v_spec = _resident_spec((1, S, H), lambda b, s: (b, 0, 2))
    wo_spec = _resident_spec((H, H), lambda b, s: (0, 0))
    bo_spec = _resident_spec((1, H), lambda b, s: (0, 0))
    o_spec = pl.BlockSpec((1, seq_tile, H), lambda b, s: (b, s, 0))

    need = (2 * seq_tile * H * 2          # q tile (double-buffered, bf16)
            + 2 * S * H * 2               # K + V (single-buffered, bf16)
            + H * H * 2 + H * 4           # Wo (bf16) + bias (f32)
            + 2 * seq_tile * H * 4        # output tile (f32, double-buffered)
            + seq_tile * H * 2            # ctx slab scratch (bf16)
            + 4 * seq_tile * S * 4)       # (TSQ, S) f32 score/softmax temporaries

    kern = functools.partial(_attn_out_kernel, heads=heads, head_dim=head_dim)
    return pl.pallas_call(
        kern,
        grid=grid,
        in_specs=[q_spec, k_spec, v_spec, wo_spec, bo_spec],
        out_specs=o_spec,
        out_shape=jax.ShapeDtypeStruct((B, S, H), jnp.float32),
        scratch_shapes=[pltpu.VMEM((seq_tile, H), jnp.bfloat16)],
        compiler_params=pltpu.CompilerParams(
            dimension_semantics=("parallel", "parallel"),
            vmem_limit_bytes=_vmem_limit(need)),
    )(qkv, qkv, qkv, wo_t, bo)


# ---------------------------------------------------------------------------
# Full forward: wrapper does the one-time weight folding / transposition /
# bf16 casts; the two Pallas kernels do all per-token work.
# ---------------------------------------------------------------------------
def lora_attn_forward(hidden_states, params, *, heads, scale=1.0,
                      lora_module_scale=1.0, seq_tile=256):
    B, S, H = hidden_states.shape
    head_dim = H // heads
    lora_scale = scale * lora_module_scale
    attn_scale = 1.0 / (head_dim ** 0.5)

    def fold(w, wd, wu):
        # x @ W_eff^T == (x @ W^T) + lora_scale * ((x @ W^T) @ Wd^T) @ Wu^T
        # (this module applies LoRA to the projection OUTPUT -- matches the spec).
        return w + lora_scale * (wu @ (wd @ w))

    wq_eff = fold(params["wq"], params["wq_down"], params["wq_up"]) * attn_scale
    wk_eff = fold(params["wk"], params["wk_down"], params["wk_up"])
    wv_eff = fold(params["wv"], params["wv_down"], params["wv_up"])
    # (H, 3H) pre-transposed fused weight, bf16 MXU operand; attn_scale folded
    # into the q columns so the attention kernel never rescales q.
    w_qkv_t = jnp.concatenate([wq_eff, wk_eff, wv_eff], axis=0).T.astype(jnp.bfloat16)
    wo_t = params["wo"].T.astype(jnp.bfloat16)            # (H, H)
    bo = params["bo"].reshape(1, H).astype(jnp.float32)   # bias added in f32
    x = hidden_states.astype(jnp.bfloat16)

    st = S if S <= seq_tile else seq_tile
    # TODO(synk): pad / mask via pl.cdiv + @pl.when for S not a multiple of the
    #             tile (e.g. cross-attention S=77).
    assert S % st == 0, "sequence length must be a multiple of the seq tile"

    qkv = qkv_proj(x, w_qkv_t, seq_tile=st)
    return attn_out_proj(qkv, wo_t, bo, heads=heads, seq_tile=st)


# ---------------------------------------------------------------------------
# Pure-JAX f32 reference (unfused, matches the PyTorch module math).
# ---------------------------------------------------------------------------
def lora_attn_reference(x, params, *, heads, scale=1.0, lora_module_scale=1.0):
    B, S, H = x.shape
    head_dim = H // heads
    lora_scale = scale * lora_module_scale
    attn_scale = 1.0 / (head_dim ** 0.5)

    def proj(w, wd, wu):
        base = x @ w.T
        return base + lora_scale * ((base @ wd.T) @ wu.T)

    q = proj(params["wq"], params["wq_down"], params["wq_up"])
    k = proj(params["wk"], params["wk_down"], params["wk_up"])
    v = proj(params["wv"], params["wv_down"], params["wv_up"])

    def h2b(t):
        return t.reshape(B, S, heads, head_dim).transpose(0, 2, 1, 3)

    qh, kh, vh = h2b(q), h2b(k), h2b(v)
    scores = jnp.einsum("bhqd,bhkd->bhqk", qh, kh) * attn_scale
    probs = jax.nn.softmax(scores, axis=-1)
    ctx = jnp.einsum("bhqk,bhkd->bhqd", probs, vh)
    ctx = ctx.transpose(0, 2, 1, 3).reshape(B, S, H)
    return ctx @ params["wo"].T + params["bo"]


if __name__ == "__main__":
    # Small forward-implied shapes.  H is a multiple of 128 so the fused
    # (B, S, 3H) qkv tensor can be read as H-wide column blocks (lane tiling).
    B, S, H = 2, 8, 128
    heads = 4
    rank = 4

    key = jax.random.PRNGKey(0)
    ks = jax.random.split(key, 12)
    init = lambda k, shape, s=0.1: (s * jax.random.normal(k, shape)).astype(jnp.float32)

    params = {
        # attn projections (diffusers SDXL: to_q/to_k/to_v bias=False, to_out[0] bias=True)
        "wq": init(ks[0], (H, H)),
        "wk": init(ks[1], (H, H)),
        "wv": init(ks[2], (H, H)),
        "wo": init(ks[3], (H, H)),
        "bo": init(ks[4], (H,)),
        # LoRA weights: nn.Linear(hidden, rank) -> (rank, hidden); nn.Linear(rank, hidden) -> (hidden, rank)
        "wq_down": init(ks[5], (rank, H)),
        "wq_up": init(ks[6], (H, rank)),
        "wk_down": init(ks[7], (rank, H)),
        "wk_up": init(ks[8], (H, rank)),
        "wv_down": init(ks[9], (rank, H)),
        "wv_up": init(ks[10], (H, rank)),
    }

    hidden_states = jax.random.normal(ks[11], (B, S, H), dtype=jnp.float32)

    out = lora_attn_forward(hidden_states, params, heads=heads,
                            scale=1.0, lora_module_scale=1.0)
    out = jax.block_until_ready(out)
    assert out.shape == (B, S, H)

    ref = lora_attn_reference(hidden_states, params, heads=heads,
                              scale=1.0, lora_module_scale=1.0)
    # bf16 MXU operands + EUP approx reciprocal + folded-weight rounding order
    # -> compare with a normalized tolerance instead of f32-exact.
    max_err = float(jnp.max(jnp.abs(out - ref)))
    ref_scale = float(jnp.max(jnp.abs(ref)))
    assert max_err <= 0.06 * ref_scale + 1e-3, (
        f"Pallas output mismatch vs reference: max_err={max_err}, ref_scale={ref_scale}")

    # to_out[1] is nn.Dropout -> identity at inference; nothing to compute.
    print("KERNEL_OK")
</pallas_src>

<mosaic_0001>
module attributes {stable_mosaic.version = 11 : i64} {
  func.func @_probe(%arg0: i32, %arg1: memref<8x128xf32, #tpu.memory_space<vmem>>, %arg2: memref<8x128xf32, #tpu.memory_space<vmem>>, %arg3: memref<8x128xf32, #tpu.memory_space<vmem>>) attributes {dimension_semantics = [#tpu.dimension_semantics<arbitrary>], iteration_bounds = array<i64: 2>, scalar_prefetch = 0 : i64, scratch_operands = 0 : i64, tpu.core_type = #tpu.core_type<tc>, window_params = [{pipeline_mode = #tpu.pipeline_mode<synchronous>, transform_indices = @transform_0, window_bounds = array<i64: 8, 128>}, {pipeline_mode = #tpu.pipeline_mode<synchronous>, transform_indices = @transform_1, window_bounds = array<i64: 8, 128>}, {transform_indices = @transform_2, window_bounds = array<i64: 8, 128>}]} {
    %c0 = arith.constant 0 : index
    %c0_0 = arith.constant 0 : index
    %0 = vector.load %arg1[%c0, %c0_0] : memref<8x128xf32, #tpu.memory_space<vmem>>, vector<8x128xf32>
    %c0_1 = arith.constant 0 : index
    %c0_2 = arith.constant 0 : index
    %1 = vector.load %arg2[%c0_1, %c0_2] : memref<8x128xf32, #tpu.memory_space<vmem>>, vector<8x128xf32>
    %2 = arith.addf %0, %1 : vector<8x128xf32>
    %c0_3 = arith.constant 0 : index
    %c0_4 = arith.constant 0 : index
    %3 = vector.load %arg3[%c0_3, %c0_4] : memref<8x128xf32, #tpu.memory_space<vmem>>, vector<8x128xf32>
    tpu.vector_store %arg3[%c0_3, %c0_4], %2 {strides = array<i32>} : memref<8x128xf32, #tpu.memory_space<vmem>>, vector<8x128xf32>,
    return
  }
  func.func @transform_0(%arg0: i32) -> (i32, i32) {
    %c0_i32 = arith.constant 0 : i32
    %c0_i32_0 = arith.constant 0 : i32
    %c0_i32_1 = arith.constant 0 : i32
    return %c0_i32, %c0_i32_0 : i32, i32
  }
  func.func @transform_1(%arg0: i32) -> (i32, i32) {
    %c0_i32 = arith.constant 0 : i32
    %c0_i32_0 = arith.constant 0 : i32
    return %arg0, %c0_i32 : i32, i32
  }
  func.func @transform_2(%arg0: i32) -> (i32, i32) {
    %c0_i32 = arith.constant 0 : i32
    %c0_i32_0 = arith.constant 0 : i32
    return %arg0, %c0_i32 : i32, i32
  }
}

module attributes {stable_mosaic.version = 11 : i64} {
  func.func @_qkv_proj_kernel(%arg0: i32, %arg1: i32, %arg2: memref<1x8x128xbf16, #tpu.memory_space<vmem>>, %arg3: memref<128x384xbf16, #tpu.memory_space<vmem>>, %arg4: memref<1x8x384xbf16, #tpu.memory_space<vmem>>) attributes {dimension_semantics = [#tpu.dimension_semantics<parallel>, #tpu.dimension_semantics<parallel>], iteration_bounds = array<i64: 2, 1>, scalar_prefetch = 0 : i64, scratch_operands = 0 : i64, tpu.core_type = #tpu.core_type<tc>, window_params = [{transform_indices = @transform_0, window_bounds = array<i64: 1, 8, 128>}, {pipeline_mode = #tpu.pipeline_mode<synchronous>, transform_indices = @transform_1, window_bounds = array<i64: 128, 384>}, {transform_indices = @transform_2, window_bounds = array<i64: 1, 8, 384>}]} {
    %c0 = arith.constant 0 : index
    %c0_0 = arith.constant 0 : index
    %c0_1 = arith.constant 0 : index
    %0 = vector.load %arg2[%c0, %c0_0, %c0_1] : memref<1x8x128xbf16, #tpu.memory_space<vmem>>, vector<1x8x128xbf16>
    %1 = vector.shape_cast %0 : vector<1x8x128xbf16> to vector<8x128xbf16>
    %c0_2 = arith.constant 0 : index
    %c0_3 = arith.constant 0 : index
    %2 = vector.load %arg3[%c0_2, %c0_3] : memref<128x384xbf16, #tpu.memory_space<vmem>>, vector<128x384xbf16>
    %cst = arith.constant dense<0.000000e+00> : vector<8x384xf32>
    %3 = tpu.matmul %1, %2, %cst {dimension_numbers = #tpu.dot_dimension_numbers<[1], [0], [0], [1], [0, 0, 1, 1], [], []>} : vector<8x128xbf16>, vector<128x384xbf16>, vector<8x384xf32> -> vector<8x384xf32>
    %4 = arith.truncf %3 : vector<8x384xf32> to vector<8x384xbf16>
    %c0_4 = arith.constant 0 : index
    %c0_5 = arith.constant 0 : index
    %c0_6 = arith.constant 0 : index
    %5 = vector.load %arg4[%c0_4, %c0_5, %c0_6] : memref<1x8x384xbf16, #tpu.memory_space<vmem>>, vector<1x8x384xbf16>
    %6 = vector.shape_cast %5 : vector<1x8x384xbf16> to vector<8x384xbf16>
    %7 = vector.shape_cast %4 : vector<8x384xbf16> to vector<1x8x384xbf16>
    tpu.vector_store %arg4[%c0_4, %c0_5, %c0_6], %7 {strides = array<i32>} : memref<1x8x384xbf16, #tpu.memory_space<vmem>>, vector<1x8x384xbf16>,
    return
  }
  func.func @transform_0(%arg0: i32, %arg1: i32) -> (i32, i32, i32) {
    %c0_i32 = arith.constant 0 : i32
    %c0_i32_0 = arith.constant 0 : i32
    return %arg0, %arg1, %c0_i32 : i32, i32, i32
  }
  func.func @transform_1(%arg0: i32, %arg1: i32) -> (i32, i32) {
    %c0_i32 = arith.constant 0 : i32
    %c0_i32_0 = arith.constant 0 : i32
    %c0_i32_1 = arith.constant 0 : i32
    return %c0_i32, %c0_i32_0 : i32, i32
  }
  func.func @transform_2(%arg0: i32, %arg1: i32) -> (i32, i32, i32) {
    %c0_i32 = arith.constant 0 : i32
    %c0_i32_0 = arith.constant 0 : i32
    return %arg0, %arg1, %c0_i32 : i32, i32, i32
  }
}

</mosaic_0001>

<llo_original>
// kernel: tpu_custom_call.1
$region0: #{tpu_custom_call.1}
  #allocation0 [shape = 'u32[]', space=smem, size = 0x4, offset = 0x4, fixed_abs, tag = 'smem constant byte address 0x4 - core index']
  #allocation1 [shape = 'u32[144,128]{1,0:T(1,128)}', space=vmem, size = 0x12000, scoped, tag = 'internal scratch']
  %s0 = inlined_call_operand.hbm [shape: f32[8,128], index: 0, kind: input, shape index: {}]
  %s1 = inlined_call_operand.hbm [shape: f32[16,128], index: 1, kind: input, shape index: {}]
  %s2 = inlined_call_operand.hbm [shape: f32[16,128], index: 2, kind: output, shape index: {}]
  %s3 = sld [smem:[#allocation0]]
  $region49: #{tpu_custom_call.1} parent=0
    _
  %s5 = ssub.s32 1, %s3
  %s6 = scalar_select 0, %s5, %s3
  $region1: #{tpu_custom_call.1} parent=0
    #allocation2 [shape = 'u8[4096]{0}', space=vmem, size = 0x1000, scoped, tag = 'input window, operand 0, single buffered']
    #allocation3 [shape = 's32[2]{0}', space=sflag, size = 0x8, scoped, tag = 'scoped memory for tpu_custom_call.1']
    #allocation4 [shape = 's32[2]{0}', space=sflag, size = 0x8, scoped, tag = 'scoped memory for tpu_custom_call.1']
    #allocation5 [shape = 'u8[4096]{0}', space=vmem, size = 0x1000, scoped, tag = 'input window, operand 1, single buffered']
    #allocation6 [shape = 's32[1]{0}', space=sflag, size = 0x4, scoped, tag = 'scoped memory for tpu_custom_call.1']
    #allocation7 [shape = 'u8[8192]{0}', space=vmem, size = 0x2000, scoped, tag = 'output window, operand 0']
    %7 = vsyncpa [#allocation3], 0
    %8 = vsyncpa [#allocation6], 0
    %9 = vsyncpa [#allocation4], 0
    %s10 = scalar_lea.sflag [#allocation4], 1
    %11 = vsyncpa %s10, 0
    loop: start=0, step=1, limit=4
    $region2: #{tpu_custom_call.1} parent=1 // loop_pre_header
      _
    $region3: #{tpu_custom_call.1} parent=1 // loop_header
      %s13 = sphi 0, %s17
      %p14 = scmp.ge.s32.totalorder %s13, 4
      %s21 = sphi 0, %s21
      %s23 = sphi 0, %s21
      %s24 = sphi 0, %s23
      %s38 = sphi 0, %s24
      %s44 = sphi 0, %s46
      %s47 = sphi 0, %s44
      %s48 = sphi 0, %s47
      %s64 = sphi 0, %s48
      %s70 = sphi 0, %s72
      %s73 = sphi 0, %s70
      %s74 = sphi 0, %s73
      %s90 = sphi 0, %s74
    $region4: #{tpu_custom_call.1} parent=1 // loop_header_branch
      %16 = sbr.rel (%p14) target = $region8
    $region5: #{tpu_custom_call.1} parent=1 // loop_body
      %s18 = ssub.s32 %s13, 1
      %s19 = ssub.s32 %s13, 2
      %s20 = sadd.s32 %s13, 1
      %s22 = sadd.s32 %s21, 1
      %p25 = scmp.eq.s32.totalorder %s13, 1
      %p26 = scmp.ne.s32.totalorder %s21, %s23
      %p27 = scmp.eq.s32.totalorder %s13, 0
      %p28 = por %p26, %p27
      %p29 = scmp.ne.s32.totalorder %s21, %s23
      %p30 = scmp.eq.s32.totalorder %s18, 1
      %p31 = por %p29, %p30
      %p32 = scmp.ne.s32.totalorder %s23, %s24
      %p33 = scmp.eq.s32.totalorder %s18, 0
      %p34 = por %p32, %p33
      %p35 = scmp.ne.s32.totalorder %s23, %s24
      %p36 = scmp.eq.s32.totalorder %s19, 1
      %p37 = por %p35, %p36
      %p39 = scmp.ne.s32.totalorder %s24, %s38
      %p40 = scmp.eq.s32.totalorder %s19, 0
      %p41 = por %p39, %p40
      %s42 = ssub.s32 %s13, %s20
      %p43 = scmp.eq.s32.totalorder %s42, 0
      %s45 = sadd.s32 %s44, 1
      %s46 = scalar_select %p43, %s44, %s45
      %p49 = pneg %p43
      %p50 = scmp.eq.s32.totalorder %s13, 1
      %p51 = por %p49, %p50
      %p52 = scmp.ne.s32.totalorder %s44, %s47
      %p53 = scmp.eq.s32.totalorder %s13, 0
      %p54 = por %p52, %p53
      %p55 = scmp.ne.s32.totalorder %s44, %s47
      %p56 = scmp.eq.s32.totalorder %s18, 1
      %p57 = por %p55, %p56
      %p58 = scmp.ne.s32.totalorder %s47, %s48
      %p59 = scmp.eq.s32.totalorder %s18, 0
      %p60 = por %p58, %p59
      %p61 = scmp.ne.s32.totalorder %s47, %s48
      %p62 = scmp.eq.s32.totalorder %s19, 1
      %p63 = por %p61, %p62
      %p65 = scmp.ne.s32.totalorder %s48, %s64
      %p66 = scmp.eq.s32.totalorder %s19, 0
      %p67 = por %p65, %p66
      %s68 = ssub.s32 %s13, %s20
      %p69 = scmp.eq.s32.totalorder %s68, 0
      %s71 = sadd.s32 %s70, 1
      %s72 = scalar_select %p69, %s70, %s71
      %p75 = pneg %p69
      %p76 = scmp.eq.s32.totalorder %s13, 1
      %p77 = por %p75, %p76
      %p78 = scmp.ne.s32.totalorder %s70, %s73
      %p79 = scmp.eq.s32.totalorder %s13, 0
      %p80 = por %p78, %p79
      %p81 = scmp.ne.s32.totalorder %s70, %s73
      %p82 = scmp.eq.s32.totalorder %s18, 1
      %p83 = por %p81, %p82
      %p84 = scmp.ne.s32.totalorder %s73, %s74
      %p85 = scmp.eq.s32.totalorder %s18, 0
      %p86 = por %p84, %p85
      %p87 = scmp.ne.s32.totalorder %s73, %s74
      %p88 = scmp.eq.s32.totalorder %s19, 1
      %p89 = por %p87, %p88
      %p91 = scmp.ne.s32.totalorder %s74, %s90
      %p92 = scmp.eq.s32.totalorder %s19, 0
      %p93 = por %p91, %p92
      %p94 = scmp.le.s32.totalorder 1, %s13
      %p95 = scmp.lt.s32.totalorder %s13, 3
      %p96 = pnand %p94, %p95
      %p97 = pneg %p96
      // Predicated region
      $region9: #{tpu_custom_call.1} parent=5 // pred_check
        _
      $region10: #{tpu_custom_call.1} parent=5 // pred_check_branch
        %99 = sbr.rel (%p96) target = $region12
      $region11: #{tpu_custom_call.1} parent=5 // pred_region
        %s100 = ssub.s32 %s13, 1
        // Predicated region
        $region13: #{tpu_custom_call.1} parent=11 // pred_check
          %p101 = pneg %p34
        $region14: #{tpu_custom_call.1} parent=11 // pred_check_branch
          %103 = sbr.rel (%p101) target = $region16
        $region15: #{tpu_custom_call.1} parent=11 // pred_region
          %s105 = ssub.s32 128, 128
          %106 = vsyncadd [#allocation3], %s105
          %s108 = sshll.u32 [#allocation2], 4
          %s109 = int_to_ptr.vmem [resolvable:$true] %s108
          %111 = dma.hbm_to_vmem [thread:$0]  %s0, 128, %s109, [#allocation3]
        $region16: #{tpu_custom_call.1} parent=11 // pred_fallthru
          _
        // Predicated region
        $region17: #{tpu_custom_call.1} parent=11 // pred_check
          %p112 = pneg %p60
        $region18: #{tpu_custom_call.1} parent=11 // pred_check_branch
          %114 = sbr.rel (%p112) target = $region20
        $region19: #{tpu_custom_call.1} parent=11 // pred_region
          %s116 = ssub.s32 128, 128
          %117 = vsyncadd [#allocation6], %s116
          %s118 = smul.addr %s18, 128
          %s119 = scalar_lea.hbm %s1, %s118
          %s121 = sshll.u32 [#allocation5], 4
          %s122 = int_to_ptr.vmem [resolvable:$true] %s121
          %124 = dma.hbm_to_vmem [thread:$0]  %s119, 128, %s122, [#allocation6]
        $region20: #{tpu_custom_call.1} parent=11 // pred_fallthru
          _
      $region12: #{tpu_custom_call.1} parent=5 // pred_fallthru
        _
      %p125 = scmp.lt.s32.totalorder %s13, 2
      // Predicated region
      $region21: #{tpu_custom_call.1} parent=5 // pred_check
        %p126 = pneg %p125
      $region22: #{tpu_custom_call.1} parent=5 // pred_check_branch
        %128 = sbr.rel (%p126) target = $region24
      $region23: #{tpu_custom_call.1} parent=5 // pred_region
        _
      $region24: #{tpu_custom_call.1} parent=5 // pred_fallthru
        _
      %p129 = scmp.le.s32.totalorder 1, %s13
      %p130 = scmp.lt.s32.totalorder %s13, 3
      %p131 = pnand %p129, %p130
      %p132 = pneg %p131
      // Predicated region
      $region25: #{tpu_custom_call.1} parent=5 // pred_check
        _
      $region26: #{tpu_custom_call.1} parent=5 // pred_check_branch
        %134 = sbr.rel (%p131) target = $region28
      $region27: #{tpu_custom_call.1} parent=5 // pred_region
        %s135 = ssub.s32 %s13, 1
        // Predicated region
        $region29: #{tpu_custom_call.1} parent=27 // pred_check
          %p136 = pneg %p34
        $region30: #{tpu_custom_call.1} parent=27 // pred_check_branch
          %138 = sbr.rel (%p136) target = $region32
        $region31: #{tpu_custom_call.1} parent=27 // pred_region
          %139 = dma.done [#allocation3], 128
        $region32: #{tpu_custom_call.1} parent=27 // pred_fallthru
          _
        // Predicated region
        $region33: #{tpu_custom_call.1} parent=27 // pred_check
          %p140 = pneg %p60
        $region34: #{tpu_custom_call.1} parent=27 // pred_check_branch
          %142 = sbr.rel (%p140) target = $region36
        $region35: #{tpu_custom_call.1} parent=27 // pred_region
          %143 = dma.done [#allocation6], 128
        $region36: #{tpu_custom_call.1} parent=27 // pred_fallthru
          _
        %p144 = pneg %p34
        %p145 = pneg %p31
        %p146 = pneg %p60
        %p147 = pneg %p57
        %p148 = pneg %p86
        %p149 = pneg %p83
        %s150 = sand.u32 %s73, 1
        %s151 = scalar_lea.sflag [#allocation4], %s150
        %s152 = sand.u32 %s73, 1
        %s153 = smul.addr %s152, 8
        %s154 = scalar_lea.vmem [#allocation7], %s153
        %v155 = vld [vmem:[#allocation2] sm:$0xff]
        %v156 = vld [vmem:[#allocation5] sm:$0xff]
        %v157 = vadd.f32 %v155, %v156
        %158 = vst [vmem:[%s154] sm:$0xff] %v157
        %s159 = sand.u32 %s73, 1
        %s160 = scalar_lea.sflag [#allocation4], %s159
        %s161 = sand.u32 %s73, 1
        %s162 = smul.addr %s161, 8
        %s163 = scalar_lea.vmem [#allocation7], %s162
        // Predicated region
        $region37: #{tpu_custom_call.1} parent=27 // pred_check
          %p164 = pneg %p83
        $region38: #{tpu_custom_call.1} parent=27 // pred_check_branch
          %166 = sbr.rel (%p164) target = $region40
        $region39: #{tpu_custom_call.1} parent=27 // pred_region
          %s168 = ssub.s32 128, 128
          %169 = vsyncadd %s160, %s168
          %s170 = smul.addr %s18, 128
          %s171 = scalar_lea.hbm %s2, %s170
          %s173 = sshll.u32 %s163, 4
          %s174 = int_to_ptr.vmem [resolvable:$true] %s173
          %176 = dma.vmem_to_hbm [thread:$0]  %s174, 128, %s171, %s160
        $region40: #{tpu_custom_call.1} parent=27 // pred_fallthru
          _
      $region28: #{tpu_custom_call.1} parent=5 // pred_fallthru
        _
      %p177 = scmp.le.s32.totalorder 2, %s13
      // Predicated region
      $region41: #{tpu_custom_call.1} parent=5 // pred_check
        %p178 = pneg %p177
      $region42: #{tpu_custom_call.1} parent=5 // pred_check_branch
        %180 = sbr.rel (%p178) target = $region44
      $region43: #{tpu_custom_call.1} parent=5 // pred_region
        %s181 = ssub.s32 %s13, 2
        // Predicated region
        $region45: #{tpu_custom_call.1} parent=43 // pred_check
          %p182 = pneg %p89
        $region46: #{tpu_custom_call.1} parent=43 // pred_check_branch
          %184 = sbr.rel (%p182) target = $region48
        $region47: #{tpu_custom_call.1} parent=43 // pred_region
          %s185 = sand.u32 %s74, 1
          %s186 = scalar_lea.sflag [#allocation4], %s185
          %s187 = sand.u32 %s74, 1
          %s188 = smul.addr %s187, 8
          %s189 = scalar_lea.vmem [#allocation7], %s188
          %190 = dma.done %s186, 128
        $region48: #{tpu_custom_call.1} parent=43 // pred_fallthru
          _
      $region44: #{tpu_custom_call.1} parent=5 // pred_fallthru
        _
    $region6: #{tpu_custom_call.1} parent=1 // loop_footer
      %s17 = sadd.s32 1, %s13
    $region7: #{tpu_custom_call.1} parent=1 // loop_footer_branch
      %12 = sbr.rel target = $region3
    $region8: #{tpu_custom_call.1} parent=1 // loop_exit
      _
    %191 = vsyncpa [#allocation3], 1
    %s192 = scalar_lea.sflag [#allocation3], 1
    %193 = vsyncpa %s192, 1
    %194 = vsyncpa [#allocation6], 1
    %195 = vsyncpa [#allocation4], 1
    %s196 = scalar_lea.sflag [#allocation4], 1
    %197 = vsyncpa %s196, 1

// kernel: tpu_custom_call.1
$region0: #{tpu_custom_call.1}
  #allocation0 [shape = 'u32[]', space=smem, size = 0x4, offset = 0x4, fixed_abs, tag = 'smem constant byte address 0x4 - core index']
  #allocation1 [shape = 'u32[144,128]{1,0:T(1,128)}', space=vmem, size = 0x12000, scoped, tag = 'internal scratch']
  %s0 = inlined_call_operand.hbm [shape: bf16[2,8,128], index: 0, kind: input, shape index: {}]
  %s1 = inlined_call_operand.hbm [shape: bf16[128,384], index: 1, kind: input, shape index: {}]
  %s2 = inlined_call_operand.hbm [shape: bf16[2,8,384], index: 2, kind: output, shape index: {}]
  %s3 = sld [smem:[#allocation0]]
  $region49: #{tpu_custom_call.1} parent=0
    _
  %s5 = ssub.s32 1, %s3
  %s6 = scalar_select 0, %s5, %s3
  $region1: #{tpu_custom_call.1} parent=0
    #allocation2 [shape = 'u8[4096]{0}', space=vmem, size = 0x1000, scoped, tag = 'input window, operand 0']
    #allocation3 [shape = 's32[2]{0}', space=sflag, size = 0x8, scoped, tag = 'scoped memory for tpu_custom_call.1']
    #allocation4 [shape = 's32[2]{0}', space=sflag, size = 0x8, scoped, tag = 'scoped memory for tpu_custom_call.1']
    #allocation5 [shape = 'u8[98304]{0}', space=vmem, size = 0x18000, scoped, tag = 'input window, operand 1, single buffered']
    #allocation6 [shape = 's32[1]{0}', space=sflag, size = 0x4, scoped, tag = 'scoped memory for tpu_custom_call.1']
    #allocation7 [shape = 'u8[12288]{0}', space=vmem, size = 0x3000, scoped, tag = 'output window, operand 0']
    %7 = vsyncpa [#allocation3], 0
    %s8 = scalar_lea.sflag [#allocation3], 1
    %9 = vsyncpa %s8, 0
    %10 = vsyncpa [#allocation6], 0
    %11 = vsyncpa [#allocation4], 0
    %s12 = scalar_lea.sflag [#allocation4], 1
    %13 = vsyncpa %s12, 0
    loop: start=0, step=1, limit=4
    $region2: #{tpu_custom_call.1} parent=1 // loop_pre_header
      _
    $region3: #{tpu_custom_call.1} parent=1 // loop_header
      %s15 = sphi 0, %s19
      %p16 = scmp.ge.s32.totalorder %s15, 4
      %s22 = sphi 0, %s34
      %s23 = sphi 0, %s30
      %s24 = sphi 0, %s22
      %s25 = sphi 0, %s23
      %s26 = sphi 0, %s24
      %s27 = sphi 0, %s25
      %s39 = sphi 0, %s41
      %s42 = sphi 0, %s39
      %s43 = sphi 0, %s42
      %s59 = sphi 0, %s43
      %s63 = sphi 0, %s63
      %s65 = sphi 0, %s63
      %s66 = sphi 0, %s65
      %s80 = sphi 0, %s66
      %s88 = sphi 0, %s90
      %s91 = sphi 0, %s88
      %s92 = sphi 0, %s91
      %s108 = sphi 0, %s92
    $region4: #{tpu_custom_call.1} parent=1 // loop_header_branch
      %18 = sbr.rel (%p16) target = $region8
    $region5: #{tpu_custom_call.1} parent=1 // loop_body
      %s20 = ssub.s32 %s15, 1
      %s21 = ssub.s32 %s15, 2
      %s28 = sadd.s32 1, %s23
      %p29 = scmp.ge.s32.totalorder %s28, 1
      %s30 = scalar_select %p29, 0, %s28
      %s31 = sadd.s32 1, %s22
      %s32 = scalar_select %p29, %s31, %s22
      %p33 = scmp.ge.s32.totalorder %s32, 2
      %s34 = scalar_select %p33, 0, %s32
      %s35 = ssub.s32 %s22, %s34
      %s36 = ssub.s32 %s23, %s30
      %s37 = sor.u32 %s35, %s36
      %p38 = scmp.eq.s32.totalorder %s37, 0
      %s40 = sadd.s32 %s39, 1
      %s41 = scalar_select %p38, %s39, %s40
      %p44 = pneg %p38
      %p45 = scmp.eq.s32.totalorder %s15, 1
      %p46 = por %p44, %p45
      %p47 = scmp.ne.s32.totalorder %s39, %s42
      %p48 = scmp.eq.s32.totalorder %s15, 0
      %p49 = por %p47, %p48
      %p50 = scmp.ne.s32.totalorder %s39, %s42
      %p51 = scmp.eq.s32.totalorder %s20, 1
      %p52 = por %p50, %p51
      %p53 = scmp.ne.s32.totalorder %s42, %s43
      %p54 = scmp.eq.s32.totalorder %s20, 0
      %p55 = por %p53, %p54
      %p56 = scmp.ne.s32.totalorder %s42, %s43
      %p57 = scmp.eq.s32.totalorder %s21, 1
      %p58 = por %p56, %p57
      %p60 = scmp.ne.s32.totalorder %s43, %s59
      %p61 = scmp.eq.s32.totalorder %s21, 0
      %p62 = por %p60, %p61
      %s64 = sadd.s32 %s63, 1
      %p67 = scmp.eq.s32.totalorder %s15, 1
      %p68 = scmp.ne.s32.totalorder %s63, %s65
      %p69 = scmp.eq.s32.totalorder %s15, 0
      %p70 = por %p68, %p69
      %p71 = scmp.ne.s32.totalorder %s63, %s65
      %p72 = scmp.eq.s32.totalorder %s20, 1
      %p73 = por %p71, %p72
      %p74 = scmp.ne.s32.totalorder %s65, %s66
      %p75 = scmp.eq.s32.totalorder %s20, 0
      %p76 = por %p74, %p75
      %p77 = scmp.ne.s32.totalorder %s65, %s66
      %p78 = scmp.eq.s32.totalorder %s21, 1
      %p79 = por %p77, %p78
      %p81 = scmp.ne.s32.totalorder %s66, %s80
      %p82 = scmp.eq.s32.totalorder %s21, 0
      %p83 = por %p81, %p82
      %s84 = ssub.s32 %s22, %s34
      %s85 = ssub.s32 %s23, %s30
      %s86 = sor.u32 %s84, %s85
      %p87 = scmp.eq.s32.totalorder %s86, 0
      %s89 = sadd.s32 %s88, 1
      %s90 = scalar_select %p87, %s88, %s89
      %p93 = pneg %p87
      %p94 = scmp.eq.s32.totalorder %s15, 1
      %p95 = por %p93, %p94
      %p96 = scmp.ne.s32.totalorder %s88, %s91
      %p97 = scmp.eq.s32.totalorder %s15, 0
      %p98 = por %p96, %p97
      %p99 = scmp.ne.s32.totalorder %s88, %s91
      %p100 = scmp.eq.s32.totalorder %s20, 1
      %p101 = por %p99, %p100
      %p102 = scmp.ne.s32.totalorder %s91, %s92
      %p103 = scmp.eq.s32.totalorder %s20, 0
      %p104 = por %p102, %p103
      %p105 = scmp.ne.s32.totalorder %s91, %s92
      %p106 = scmp.eq.s32.totalorder %s21, 1
      %p107 = por %p105, %p106
      %p109 = scmp.ne.s32.totalorder %s92, %s108
      %p110 = scmp.eq.s32.totalorder %s21, 0
      %p111 = por %p109, %p110
      %p112 = scmp.le.s32.totalorder 1, %s15
      %p113 = scmp.lt.s32.totalorder %s15, 3
      %p114 = pnand %p112, %p113
      %p115 = pneg %p114
      // Predicated region
      $region9: #{tpu_custom_call.1} parent=5 // pred_check
        _
      $region10: #{tpu_custom_call.1} parent=5 // pred_check_branch
        %117 = sbr.rel (%p114) target = $region12
      $region11: #{tpu_custom_call.1} parent=5 // pred_region
        %s118 = ssub.s32 %s15, 1
        // Predicated region
        $region13: #{tpu_custom_call.1} parent=11 // pred_check
          %p119 = pneg %p76
        $region14: #{tpu_custom_call.1} parent=11 // pred_check_branch
          %121 = sbr.rel (%p119) target = $region16
        $region15: #{tpu_custom_call.1} parent=11 // pred_region
          %s123 = ssub.s32 3072, 3072
          %124 = vsyncadd [#allocation6], %s123
          %s125 = sshll.u32 [#allocation5], 4
          %s126 = int_to_ptr.vmem [resolvable:$true] %s125
          %131 = dma.hbm_to_vmem [thread:$0]  %s1, 3072, %s126, [#allocation6], 192, 192, 12
        $region16: #{tpu_custom_call.1} parent=11 // pred_fallthru
          _
      $region12: #{tpu_custom_call.1} parent=5 // pred_fallthru
        _
      %p132 = scmp.lt.s32.totalorder %s15, 2
      // Predicated region
      $region17: #{tpu_custom_call.1} parent=5 // pred_check
        %p133 = pneg %p132
      $region18: #{tpu_custom_call.1} parent=5 // pred_check_branch
        %135 = sbr.rel (%p133) target = $region20
      $region19: #{tpu_custom_call.1} parent=5 // pred_region
        // Predicated region
        $region21: #{tpu_custom_call.1} parent=19 // pred_check
          %p136 = pneg %p49
        $region22: #{tpu_custom_call.1} parent=19 // pred_check_branch
          %138 = sbr.rel (%p136) target = $region24
        $region23: #{tpu_custom_call.1} parent=19 // pred_region
          %s139 = sand.u32 %s39, 1
          %s140 = scalar_lea.sflag [#allocation3], %s139
          %s141 = sand.u32 %s39, 1
          %s142 = smul.addr %s141, 4
          %s143 = scalar_lea.vmem [#allocation2], %s142
          %s145 = ssub.s32 64, 64
          %146 = vsyncadd %s140, %s145
          %s147 = sadd.s32 %s23, %s22
          %s148 = smul.addr %s147, 64
          %s149 = scalar_lea.hbm %s0, %s148
          %s151 = sshll.u32 %s143, 4
          %s152 = int_to_ptr.vmem [resolvable:$true] %s151
          %154 = dma.hbm_to_vmem [thread:$0]  %s149, 64, %s152, %s140
        $region24: #{tpu_custom_call.1} parent=19 // pred_fallthru
          _
      $region20: #{tpu_custom_call.1} parent=5 // pred_fallthru
        _
      %p155 = scmp.le.s32.totalorder 1, %s15
      %p156 = scmp.lt.s32.totalorder %s15, 3
      %p157 = pnand %p155, %p156
      %p158 = pneg %p157
      // Predicated region
      $region25: #{tpu_custom_call.1} parent=5 // pred_check
        _
      $region26: #{tpu_custom_call.1} parent=5 // pred_check_branch
        %160 = sbr.rel (%p157) target = $region28
      $region27: #{tpu_custom_call.1} parent=5 // pred_region
        %s161 = ssub.s32 %s15, 1
        %s162 = sand.u32 %s42, 1
        %s163 = scalar_lea.sflag [#allocation3], %s162
        %s164 = sand.u32 %s42, 1
        %s165 = smul.addr %s164, 4
        %s166 = scalar_lea.vmem [#allocation2], %s165
        // Predicated region
        $region29: #{tpu_custom_call.1} parent=27 // pred_check
          %p167 = pneg %p55
        $region30: #{tpu_custom_call.1} parent=27 // pred_check_branch
          %169 = sbr.rel (%p167) target = $region32
        $region31: #{tpu_custom_call.1} parent=27 // pred_region
          %170 = dma.done %s163, 64
        $region32: #{tpu_custom_call.1} parent=27 // pred_fallthru
          _
        // Predicated region
        $region33: #{tpu_custom_call.1} parent=27 // pred_check
          %p171 = pneg %p76
        $region34: #{tpu_custom_call.1} parent=27 // pred_check_branch
          %173 = sbr.rel (%p171) target = $region36
        $region35: #{tpu_custom_call.1} parent=27 // pred_region
          %174 = dma.done [#allocation6], 3072
        $region36: #{tpu_custom_call.1} parent=27 // pred_fallthru
          _
        %s175 = sand.u32 %s42, 1
        %s176 = scalar_lea.sflag [#allocation3], %s175
        %s177 = sand.u32 %s42, 1
        %s178 = smul.addr %s177, 4
        %s179 = scalar_lea.vmem [#allocation2], %s178
        %p180 = pneg %p55
        %p181 = pneg %p52
        %p182 = pneg %p76
        %p183 = pneg %p73
        %p184 = pneg %p104
        %p185 = pneg %p101
        %s186 = sand.u32 %s91, 1
        %s187 = scalar_lea.sflag [#allocation4], %s186
        %s188 = sand.u32 %s91, 1
        %s189 = smul.addr %s188, 12
        %s190 = scalar_lea.vmem [#allocation7], %s189
        %v192 = vld [vmem:[%s166] sm:$0xf]
        %v193 = vld [vmem:[#allocation5] sm:$0xff]
        %v194 = vld [vmem:[#allocation5 + $0x8] sm:$0xf]
        %v195 = vld [vmem:[#allocation5 + $0xc] sm:$0xff]
        %v196 = vld [vmem:[#allocation5 + $0x14] sm:$0xf]
        %v197 = vld [vmem:[#allocation5 + $0x18] sm:$0xff]
        %v198 = vld [vmem:[#allocation5 + $0x20] sm:$0xf]
        %v199 = vld [vmem:[#allocation5 + $0x24] sm:$0xff]
        %v200 = vld [vmem:[#allocation5 + $0x2c] sm:$0xf]
        %v201 = vld [vmem:[#allocation5 + $0x30] sm:$0xff]
        %v202 = vld [vmem:[#allocation5 + $0x38] sm:$0xf]
        %v203 = vld [vmem:[#allocation5 + $0x3c] sm:$0xff]
        %v204 = vld [vmem:[#allocation5 + $0x44] sm:$0xf]
        %v205 = vld [vmem:[#allocation5 + $0x48] sm:$0xff]
        %v206 = vld [vmem:[#allocation5 + $0x50] sm:$0xf]
        %v207 = vld [vmem:[#allocation5 + $0x54] sm:$0xff]
        %v208 = vld [vmem:[#allocation5 + $0x5c] sm:$0xf]
        %v209 = vld [vmem:[#allocation5 + $0x60] sm:$0xff]
        %v210 = vld [vmem:[#allocation5 + $0x68] sm:$0xf]
        %v211 = vld [vmem:[#allocation5 + $0x6c] sm:$0xff]
        %v212 = vld [vmem:[#allocation5 + $0x74] sm:$0xf]
        %v213 = vld [vmem:[#allocation5 + $0x78] sm:$0xff]
        %v214 = vld [vmem:[#allocation5 + $0x80] sm:$0xf]
        %v215 = vld [vmem:[#allocation5 + $0x84] sm:$0xff]
        %v216 = vld [vmem:[#allocation5 + $0x8c] sm:$0xf]
        %v217 = vld [vmem:[#allocation5 + $0x90] sm:$0xff]
        %v218 = vld [vmem:[#allocation5 + $0x98] sm:$0xf]
        %v219 = vld [vmem:[#allocation5 + $0x9c] sm:$0xff]
        %v220 = vld [vmem:[#allocation5 + $0xa4] sm:$0xf]
        %v221 = vld [vmem:[#allocation5 + $0xa8] sm:$0xff]
        %v222 = vld [vmem:[#allocation5 + $0xb0] sm:$0xf]
        %v223 = vld [vmem:[#allocation5 + $0xb4] sm:$0xff]
        %v224 = vld [vmem:[#allocation5 + $0xbc] sm:$0xf]
        %v257 = vunpack.c.l.b16 %v193
        %v258 = vunpack.c.h.b16 %v193
        %v259 = vunpack.c.l.b16 %v194
        %v260 = vunpack.c.l.b16 %v195
        %v261 = vunpack.c.h.b16 %v195
        %v262 = vunpack.c.l.b16 %v196
        %v263 = vunpack.c.l.b16 %v197
        %v264 = vunpack.c.h.b16 %v197
        %v265 = vunpack.c.l.b16 %v198
        %v266 = vunpack.c.l.b16 %v199
        %v267 = vunpack.c.h.b16 %v199
        %v268 = vunpack.c.l.b16 %v200
        %v269 = vunpack.c.l.b16 %v201
        %v270 = vunpack.c.h.b16 %v201
        %v271 = vunpack.c.l.b16 %v202
        %v272 = vunpack.c.l.b16 %v203
        %v273 = vunpack.c.h.b16 %v203
        %v274 = vunpack.c.l.b16 %v204
        %v275 = vunpack.c.l.b16 %v205
        %v276 = vunpack.c.h.b16 %v205
        %v277 = vunpack.c.l.b16 %v206
        %v278 = vunpack.c.l.b16 %v207
        %v279 = vunpack.c.h.b16 %v207
        %v280 = vunpack.c.l.b16 %v208
        %v281 = vunpack.c.l.b16 %v209
        %v282 = vunpack.c.h.b16 %v209
        %v283 = vunpack.c.l.b16 %v210
        %v284 = vunpack.c.l.b16 %v211
        %v285 = vunpack.c.h.b16 %v211
        %v286 = vunpack.c.l.b16 %v212
        %v287 = vunpack.c.l.b16 %v213
        %v288 = vunpack.c.h.b16 %v213
        %v289 = vunpack.c.l.b16 %v214
        %v290 = vunpack.c.l.b16 %v215
        %v291 = vunpack.c.h.b16 %v215
        %v292 = vunpack.c.l.b16 %v216
        %v293 = vunpack.c.l.b16 %v217
        %v294 = vunpack.c.h.b16 %v217
        %v295 = vunpack.c.l.b16 %v218
        %v296 = vunpack.c.l.b16 %v219
        %v297 = vunpack.c.h.b16 %v219
        %v298 = vunpack.c.l.b16 %v220
        %v299 = vunpack.c.l.b16 %v221
        %v300 = vunpack.c.h.b16 %v221
        %v301 = vunpack.c.l.b16 %v222
        %v302 = vunpack.c.l.b16 %v223
        %v303 = vunpack.c.h.b16 %v223
        %v304 = vunpack.c.l.b16 %v224
        %v305 = vpack.c.b16 %v260, %v257
        %v306 = vpack.c.b16 %v261, %v258
        %v307 = vpack.c.b16 %v262, %v259
        %v308 = vpack.c.b16 %v266, %v263
        %v309 = vpack.c.b16 %v267, %v264
        %v310 = vpack.c.b16 %v268, %v265
        %v311 = vpack.c.b16 %v272, %v269
        %v312 = vpack.c.b16 %v273, %v270
        %v313 = vpack.c.b16 %v274, %v271
        %v314 = vpack.c.b16 %v278, %v275
        %v315 = vpack.c.b16 %v279, %v276
        %v316 = vpack.c.b16 %v280, %v277
        %v317 = vpack.c.b16 %v284, %v281
        %v318 = vpack.c.b16 %v285, %v282
        %v319 = vpack.c.b16 %v286, %v283
        %v320 = vpack.c.b16 %v290, %v287
        %v321 = vpack.c.b16 %v291, %v288
        %v322 = vpack.c.b16 %v292, %v289
        %v323 = vpack.c.b16 %v296, %v293
        %v324 = vpack.c.b16 %v297, %v294
        %v325 = vpack.c.b16 %v298, %v295
        %v326 = vpack.c.b16 %v302, %v299
        %v327 = vpack.c.b16 %v303, %v300
        %v328 = vpack.c.b16 %v304, %v301
        %353 = vmatprep.subr.bf16.mxu0 %v306
        %354 = vmatpush1.bf16.msra.mxu0 %v305
        %355 = vmatprep.subr.bf16.mxu0 %v309
        %356 = vmatpush1.bf16.msra.mxu0 %v308
        %357 = vmatprep.subr.bf16.mxu0 %v312
        %358 = vmatpush1.bf16.msra.mxu0 %v311
        %359 = vmatprep.subr.bf16.mxu0 %v315
        %360 = vmatpush1.bf16.msra.mxu0 %v314
        %361 = vmatprep.subr.bf16.mxu0 %v318
        %362 = vmatpush1.bf16.msra.mxu0 %v317
        %363 = vmatprep.subr.bf16.mxu0 %v321
        %364 = vmatpush1.bf16.msra.mxu0 %v320
        %365 = vmatprep.subr.bf16.mxu0 %v324
        %366 = vmatpush1.bf16.msra.mxu0 %v323
        %367 = vmatprep.subr.bf16.mxu0 %v327
        %368 = vmatpush1.bf16.msra.mxu0 %v326
        %369 = vmatprep.subr.bf16.mxu0 0
        %370 = vmatpush1.bf16.msra.mxu0 0
        %371 = vmatprep.subr.bf16.mxu0 0
        %372 = vmatpush1.bf16.msra.mxu0 0
        %373 = vmatprep.subr.bf16.mxu0 0
        %374 = vmatpush1.bf16.msra.mxu0 0
        %375 = vmatprep.subr.bf16.mxu0 0
        %376 = vmatpush1.bf16.msra.mxu0 0
        %377 = vmatprep.subr.bf16.mxu0 0
        %378 = vmatpush1.bf16.msra.mxu0 0
        %379 = vmatprep.subr.bf16.mxu0 0
        %380 = vmatpush1.bf16.msra.mxu0 0
        %381 = vmatprep.subr.bf16.mxu0 0
        %382 = vmatpush1.bf16.msra.mxu0 0
        %383 = vmatprep.subr.bf16.mxu0 0
        %384 = vmatpush1.bf16.msra.mxu0 0
        %385 = vmatprep.mubr.bf16.mxu0 0
        %386 = vmatmul.mubr.bf16.gmra.mrb[0].mxu0 %v192
        %v387 = vpop.f32.mrb[0].mxu0
        %v388 = vadd.f32 0.0, %v387
        %v389 = vpop.f32.mrb[0].mxu0
        %v390 = vadd.f32 0.0, %v389
        %v391 = vpop.f32.mrb[0].mxu0
        %v392 = vpop.f32.mrb[0].mxu0
        %393 = vdwg.mxu0
        %394 = vmatprep.subr.bf16.mxu0 0
        %395 = vmatpush1.bf16.msra.mxu0 %v307
        %396 = vmatprep.subr.bf16.mxu0 0
        %397 = vmatpush1.bf16.msra.mxu0 %v310
        %398 = vmatprep.subr.bf16.mxu0 0
        %399 = vmatpush1.bf16.msra.mxu0 %v313
        %400 = vmatprep.subr.bf16.mxu0 0
        %401 = vmatpush1.bf16.msra.mxu0 %v316
        %402 = vmatprep.subr.bf16.mxu0 0
        %403 = vmatpush1.bf16.msra.mxu0 %v319
        %404 = vmatprep.subr.bf16.mxu0 0
        %405 = vmatpush1.bf16.msra.mxu0 %v322
        %406 = vmatprep.subr.bf16.mxu0 0
        %407 = vmatpush1.bf16.msra.mxu0 %v325
        %408 = vmatprep.subr.bf16.mxu0 0
        %409 = vmatpush1.bf16.msra.mxu0 %v328
        %410 = vmatprep.subr.bf16.mxu0 0
        %411 = vmatpush1.bf16.msra.mxu0 0
        %412 = vmatprep.subr.bf16.mxu0 0
        %413 = vmatpush1.bf16.msra.mxu0 0
        %414 = vmatprep.subr.bf16.mxu0 0
        %415 = vmatpush1.bf16.msra.mxu0 0
        %416 = vmatprep.subr.bf16.mxu0 0
        %417 = vmatpush1.bf16.msra.mxu0 0
        %418 = vmatprep.subr.bf16.mxu0 0
        %419 = vmatpush1.bf16.msra.mxu0 0
        %420 = vmatprep.subr.bf16.mxu0 0
        %421 = vmatpush1.bf16.msra.mxu0 0
        %422 = vmatprep.subr.bf16.mxu0 0
        %423 = vmatpush1.bf16.msra.mxu0 0
        %424 = vmatprep.subr.bf16.mxu0 0
        %425 = vmatpush1.bf16.msra.mxu0 0
        %426 = vmatprep.mubr.bf16.mxu0 0
        %427 = vmatmul.mubr.bf16.gmra.mrb[0].mxu0 %v192
        %v428 = vpop.f32.mrb[0].mxu0
        %v429 = vadd.f32 0.0, %v428
        %v430 = vpop.f32.mrb[0].mxu0
        %v431 = vpop.f32.mrb[0].mxu0
        %v432 = vpop.f32.mrb[0].mxu0
        %433 = vdwg.mxu0
        %v434 = vpack.c.bf16 %v388, %v388
        %v435 = vpack.c.bf16 %v390, %v390
        %v436 = vpack.c.bf16 %v429, %v429
        %v440 = vunpack.c.l.b16 %v434
        %v441 = vunpack.c.l.b16 %v435
        %v442 = vunpack.c.l.b16 %v436
        %v443 = vpack.c.b16 %v441, %v440
        %v444 = vpack.c.b16 %v442, %v442
        %447 = vst [vmem:[%s190] sm:$0xff] %v443
        %448 = vst [vmem:[%s190 + $0x8] sm:$0xf] %v444
        %s449 = sand.u32 %s91, 1
        %s450 = scalar_lea.sflag [#allocation4], %s449
        %s451 = sand.u32 %s91, 1
        %s452 = smul.addr %s451, 12
        %s453 = scalar_lea.vmem [#allocation7], %s452
        // Predicated region
        $region37: #{tpu_custom_call.1} parent=27 // pred_check
          %p454 = pneg %p101
        $region38: #{tpu_custom_call.1} parent=27 // pred_check_branch
          %456 = sbr.rel (%p454) target = $region40
        $region39: #{tpu_custom_call.1} parent=27 // pred_region
          %s458 = ssub.s32 192, 192
          %459 = vsyncadd %s450, %s458
          %s460 = smul.addr %s25, 3
          %s461 = smul.addr %s24, 3
          %s462 = sadd.s32 %s460, %s461
          %s463 = smul.addr %s462, 64
          %s464 = scalar_lea.hbm %s2, %s463
          %s466 = sshll.u32 %s453, 4
          %s467 = int_to_ptr.vmem [resolvable:$true] %s466
          %469 = dma.vmem_to_hbm [thread:$0]  %s467, 192, %s464, %s450
        $region40: #{tpu_custom_call.1} parent=27 // pred_fallthru
          _
      $region28: #{tpu_custom_call.1} parent=5 // pred_fallthru
        _
      %p470 = scmp.le.s32.totalorder 2, %s15
      // Predicated region
      $region41: #{tpu_custom_call.1} parent=5 // pred_check
        %p471 = pneg %p470
      $region42: #{tpu_custom_call.1} parent=5 // pred_check_branch
        %473 = sbr.rel (%p471) target = $region44
      $region43: #{tpu_custom_call.1} parent=5 // pred_region
        %s474 = ssub.s32 %s15, 2
        // Predicated region
        $region45: #{tpu_custom_call.1} parent=43 // pred_check
          %p475 = pneg %p107
        $region46: #{tpu_custom_call.1} parent=43 // pred_check_branch
          %477 = sbr.rel (%p475) target = $region48
        $region47: #{tpu_custom_call.1} parent=43 // pred_region
          %s478 = sand.u32 %s92, 1
          %s479 = scalar_lea.sflag [#allocation4], %s478
          %s480 = sand.u32 %s92, 1
          %s481 = smul.addr %s480, 12
          %s482 = scalar_lea.vmem [#allocation7], %s481
          %483 = dma.done %s479, 192
        $region48: #{tpu_custom_call.1} parent=43 // pred_fallthru
          _
      $region44: #{tpu_custom_call.1} parent=5 // pred_fallthru
        _
    $region6: #{tpu_custom_call.1} parent=1 // loop_footer
      %s19 = sadd.s32 1, %s15
    $region7: #{tpu_custom_call.1} parent=1 // loop_footer_branch
      %14 = sbr.rel target = $region3
    $region8: #{tpu_custom_call.1} parent=1 // loop_exit
      _
    %484 = vsyncpa [#allocation3], 1
    %s485 = scalar_lea.sflag [#allocation3], 1
    %486 = vsyncpa %s485, 1
    %487 = vsyncpa [#allocation6], 1
    %488 = vsyncpa [#allocation4], 1
    %s489 = scalar_lea.sflag [#allocation4], 1
    %490 = vsyncpa %s489, 1

</llo_original>
